<compile_context>
chip_gen: v5e
topology: v5e:2x2
jax: 0.10.0
libtpu: 0.0.40
codegen_flags: <defaults>
</compile_context>

<pallas_src>
from functools import partial

import jax
import jax.numpy as jnp
from jax.experimental import pallas as pl
from jax.experimental.pallas import tpu as pltpu


def _bcast_row(ref, k, nrows, via_vld):
    """Row k of `ref`, presented for a broadcast multiply against an (nrows, TB) tile."""
    if via_vld:
        # stride-0 sublane-broadcast load: the vld path replicates row k to nrows rows.
        return ref[pl.ds(k, nrows, stride=0), :]
    # Fallback: (1, TB) load; the broadcast happens implicitly in the MAC (VPU/XLU).
    return ref[k:k + 1, :]


def mlp_kernel(x_ref, w1_ref, b1_ref, w2_ref, b2_ref, w3_ref, b3_ref, o_ref, h1_scr,
               *, sublane_bcast_via_vld: bool):
    # x_ref:  (3, TB)   batch on the lane axis (lane-dense)
    # w1_ref: (15, 3)   b1_ref: (15, 1)
    # w2_ref: (10, 15)  b2_ref: (10, 1)
    # w3_ref: (10, 1)   b3_ref: (1, 1)
    # o_ref:  (1, TB)
    # h1_scr: (15, TB)  VMEM scratch: stride-0 broadcast source for layer 2.

    def sigmoid(h):
        # Single EUP pass (tanh) + two cheap VPU ops, instead of exp + full-precision
        # divide.  Mathematically identical to the logistic, full f32 precision.
        return 0.5 * jnp.tanh(0.5 * h) + 0.5

    # ---- Layer 1: h1 = sigmoid(W1 @ x + b1), unrolled K=3 VPU broadcast-MACs -------
    h1 = b1_ref[...]                                             # (15, 1)
    for k in range(3):
        x_row = _bcast_row(x_ref, k, 15, sublane_bcast_via_vld)  # row k of x, lane-dense
        h1 = h1 + w1_ref[:, k:k + 1] * x_row                     # -> (15, TB)
    h1_scr[...] = sigmoid(h1)

    # ---- Layer 2: h2 = sigmoid(W2 @ h1 + b2), unrolled K=15 VPU broadcast-MACs -----
    h2 = b2_ref[...]                                             # (10, 1)
    for k in range(15):
        h1_row = _bcast_row(h1_scr, k, 10, sublane_bcast_via_vld)
        h2 = h2 + w2_ref[:, k:k + 1] * h1_row                    # -> (10, TB)
    h2 = sigmoid(h2)

    # ---- Layer 3: out = w3 . h2 + b3 — elementwise scale + cross-sublane reduce ----
    out = jnp.sum(w3_ref[...] * h2, axis=0, keepdims=True) + b3_ref[...]   # (1, TB)
    o_ref[...] = out.astype(o_ref.dtype)


def mlp_forward(x, params, *, batch_tile=None, feature_major=False):
    """Forward pass.

    x: (B, 3) float32 (PyTorch layout), or (3, B) if feature_major=True (skips the
       wrapper transpose — the cheapest path, especially on v5e).
    params: PyTorch nn.Linear convention: w (out, in), b (out,).
    Returns (B, 1) float32.
    """
    if feature_major:
        x_t = x.astype(jnp.float32)
        F, B = x_t.shape
    else:
        B, F = x.shape
        x_t = x.T.astype(jnp.float32)          # one small transpose; no zero-pad pass
    assert F == 3

    if batch_tile is None:
        max_tile = 4096                         # big tile amortizes ~0.35us/step overhead
        steps = max(1, pl.cdiv(B, max_tile))
        if B > 128:
            steps = max(2, steps)               # keep both v7x TensorCores busy
            steps += steps % 2                  # and keep the step count even
        batch_tile = min(max_tile, pl.cdiv(pl.cdiv(B, steps), 128) * 128)
    assert batch_tile % 128 == 0
    grid = (pl.cdiv(B, batch_tile),)            # ragged tail handled by Pallas padding

    f32 = jnp.float32
    w1 = params["w1"].astype(f32)                    # (15, 3)
    b1 = params["b1"].reshape(-1, 1).astype(f32)     # (15, 1)
    w2 = params["w2"].astype(f32)                    # (10, 15)
    b2 = params["b2"].reshape(-1, 1).astype(f32)     # (10, 1)
    w3 = params["w3"].reshape(-1, 1).astype(f32)     # (10, 1) column
    b3 = params["b3"].reshape(1, 1).astype(f32)      # (1, 1)

    def const_spec(a):
        # Full-extent block + constant index_map: VMEM-resident, revisit-skipped DMA.
        return pl.BlockSpec(a.shape, lambda i: (0, 0))

    def run(via_vld: bool):
        return pl.pallas_call(
            partial(mlp_kernel, sublane_bcast_via_vld=via_vld),
            out_shape=jax.ShapeDtypeStruct((1, B), jnp.float32),
            grid=grid,
            in_specs=[
                pl.BlockSpec((3, batch_tile), lambda i: (0, i)),   # x tile, lane-dense
                const_spec(w1), const_spec(b1),
                const_spec(w2), const_spec(b2),
                const_spec(w3), const_spec(b3),
            ],
            out_specs=pl.BlockSpec((1, batch_tile), lambda i: (0, i)),  # lane-dense store
            scratch_shapes=[pltpu.VMEM((15, batch_tile), jnp.float32)],
            compiler_params=pltpu.CompilerParams(
                dimension_semantics=("parallel",),
            ),
        )(x_t, w1, b1, w2, b2, w3, b3)

    try:
        # Preferred: stride-0 sublane-broadcast loads (broadcasts ride the idle vld slots).
        out_t = jax.block_until_ready(run(True))
    except Exception:
        # Fallback: always-supported implicit-broadcast MACs (original formulation).
        out_t = run(False)

    return out_t.reshape(B, 1)


def init_params(key):
    """PyTorch nn.Linear-style shapes: weight (out,in) Xavier-uniform, bias (out,)."""
    def linear_init(key, fan_in, fan_out):
        kw, kb = jax.random.split(key)
        limit = jnp.sqrt(6.0 / (fan_in + fan_out))
        w = jax.random.uniform(kw, (fan_out, fan_in), jnp.float32, -limit, limit)
        bound = 1.0 / jnp.sqrt(float(fan_in))
        b = jax.random.uniform(kb, (fan_out,), jnp.float32, -bound, bound)
        return w, b

    k1, k2, k3 = jax.random.split(key, 3)
    w1, b1 = linear_init(k1, 3, 15)
    w2, b2 = linear_init(k2, 15, 10)
    w3, b3 = linear_init(k3, 10, 1)
    return {"w1": w1, "b1": b1, "w2": w2, "b2": b2, "w3": w3, "b3": b3}


def mlp_reference(x, p):
    h1 = jax.nn.sigmoid(x @ p["w1"].T + p["b1"])
    h2 = jax.nn.sigmoid(h1 @ p["w2"].T + p["b2"])
    return h2 @ p["w3"].T + p["b3"]


if __name__ == "__main__":
    key = jax.random.PRNGKey(0)
    kx, kp = jax.random.split(key)

    # Non-multiple-of-128 batch: exercises the ragged last block and a 2-step grid.
    B = 300
    x = jax.random.normal(kx, (B, 3), jnp.float32)
    params = init_params(kp)

    out = jax.block_until_ready(mlp_forward(x, params))
    ref = mlp_reference(x, params)

    assert out.shape == (B, 1)
    # tanh-form sigmoid matches XLA's logistic to a few f32 ulps; 1e-4 is ample margin.
    assert jnp.allclose(out, ref, atol=1e-4, rtol=1e-4), "mismatch vs reference"

    print("KERNEL_OK")
</pallas_src>

<mosaic_0001>
module attributes {stable_mosaic.version = 11 : i64} {
  func.func @mlp_kernel(%arg0: i32, %arg1: memref<3x256xf32, #tpu.memory_space<vmem>>, %arg2: memref<15x3xf32, #tpu.memory_space<vmem>>, %arg3: memref<15x1xf32, #tpu.memory_space<vmem>>, %arg4: memref<10x15xf32, #tpu.memory_space<vmem>>, %arg5: memref<10x1xf32, #tpu.memory_space<vmem>>, %arg6: memref<10x1xf32, #tpu.memory_space<vmem>>, %arg7: memref<1x1xf32, #tpu.memory_space<vmem>>, %arg8: memref<1x256xf32, #tpu.memory_space<vmem>>, %arg9: memref<15x256xf32, #tpu.memory_space<vmem>>) attributes {dimension_semantics = [#tpu.dimension_semantics<parallel>], iteration_bounds = array<i64: 2>, scalar_prefetch = 0 : i64, scratch_operands = 1 : i64, tpu.core_type = #tpu.core_type<tc>, window_params = [{transform_indices = @transform_0, window_bounds = array<i64: 3, 256>}, {pipeline_mode = #tpu.pipeline_mode<synchronous>, transform_indices = @transform_1, window_bounds = array<i64: 15, 3>}, {pipeline_mode = #tpu.pipeline_mode<synchronous>, transform_indices = @transform_2, window_bounds = array<i64: 15, 1>}, {pipeline_mode = #tpu.pipeline_mode<synchronous>, transform_indices = @transform_3, window_bounds = array<i64: 10, 15>}, {pipeline_mode = #tpu.pipeline_mode<synchronous>, transform_indices = @transform_4, window_bounds = array<i64: 10, 1>}, {pipeline_mode = #tpu.pipeline_mode<synchronous>, transform_indices = @transform_5, window_bounds = array<i64: 10, 1>}, {pipeline_mode = #tpu.pipeline_mode<synchronous>, transform_indices = @transform_6, window_bounds = array<i64: 1, 1>}, {transform_indices = @transform_7, window_bounds = array<i64: 1, 256>}]} {
    %c0 = arith.constant 0 : index
    %c0_0 = arith.constant 0 : index
    %0 = vector.load %arg3[%c0, %c0_0] : memref<15x1xf32, #tpu.memory_space<vmem>>, vector<15x1xf32>
    %c0_1 = arith.constant 0 : index
    %c0_2 = arith.constant 0 : index
    %1 = tpu.strided_load %arg1[%c0_1, %c0_2] {strides = array<i32: 0, 1>} : memref<3x256xf32, #tpu.memory_space<vmem>>, vector<15x256xf32>
    %c0_3 = arith.constant 0 : index
    %c0_4 = arith.constant 0 : index
    %2 = vector.load %arg2[%c0_3, %c0_4] : memref<15x3xf32, #tpu.memory_space<vmem>>, vector<15x1xf32>
    %3 = vector.broadcast %2 : vector<15x1xf32> to vector<15x256xf32>
    %4 = arith.mulf %3, %1 : vector<15x256xf32>
    %5 = vector.broadcast %0 : vector<15x1xf32> to vector<15x256xf32>
    %6 = arith.addf %5, %4 : vector<15x256xf32>
    %c1 = arith.constant 1 : index
    %c0_5 = arith.constant 0 : index
    %7 = tpu.strided_load %arg1[%c1, %c0_5] {strides = array<i32: 0, 1>} : memref<3x256xf32, #tpu.memory_space<vmem>>, vector<15x256xf32>
    %c0_6 = arith.constant 0 : index
    %c1_7 = arith.constant 1 : index
    %8 = vector.load %arg2[%c0_6, %c1_7] : memref<15x3xf32, #tpu.memory_space<vmem>>, vector<15x1xf32>
    %9 = vector.broadcast %8 : vector<15x1xf32> to vector<15x256xf32>
    %10 = arith.mulf %9, %7 : vector<15x256xf32>
    %11 = arith.addf %6, %10 : vector<15x256xf32>
    %c2 = arith.constant 2 : index
    %c0_8 = arith.constant 0 : index
    %12 = tpu.strided_load %arg1[%c2, %c0_8] {strides = array<i32: 0, 1>} : memref<3x256xf32, #tpu.memory_space<vmem>>, vector<15x256xf32>
    %c0_9 = arith.constant 0 : index
    %c2_10 = arith.constant 2 : index
    %13 = vector.load %arg2[%c0_9, %c2_10] : memref<15x3xf32, #tpu.memory_space<vmem>>, vector<15x1xf32>
    %14 = vector.broadcast %13 : vector<15x1xf32> to vector<15x256xf32>
    %15 = arith.mulf %14, %12 : vector<15x256xf32>
    %16 = arith.addf %11, %15 : vector<15x256xf32>
    %cst = arith.constant 5.000000e-01 : f32
    %17 = vector.broadcast %cst : f32 to vector<15x256xf32>
    %18 = arith.mulf %17, %16 : vector<15x256xf32>
    %19 = math.tanh %18 : vector<15x256xf32>
    %cst_11 = arith.constant 5.000000e-01 : f32
    %20 = vector.broadcast %cst_11 : f32 to vector<15x256xf32>
    %21 = arith.mulf %20, %19 : vector<15x256xf32>
    %cst_12 = arith.constant 5.000000e-01 : f32
    %22 = vector.broadcast %cst_12 : f32 to vector<15x256xf32>
    %23 = arith.addf %21, %22 : vector<15x256xf32>
    %c0_13 = arith.constant 0 : index
    %c0_14 = arith.constant 0 : index
    %24 = vector.load %arg9[%c0_13, %c0_14] : memref<15x256xf32, #tpu.memory_space<vmem>>, vector<15x256xf32>
    tpu.vector_store %arg9[%c0_13, %c0_14], %23 {strides = array<i32>} : memref<15x256xf32, #tpu.memory_space<vmem>>, vector<15x256xf32>,
    %c0_15 = arith.constant 0 : index
    %c0_16 = arith.constant 0 : index
    %25 = vector.load %arg5[%c0_15, %c0_16] : memref<10x1xf32, #tpu.memory_space<vmem>>, vector<10x1xf32>
    %c0_17 = arith.constant 0 : index
    %c0_18 = arith.constant 0 : index
    %26 = tpu.strided_load %arg9[%c0_17, %c0_18] {strides = array<i32: 0, 1>} : memref<15x256xf32, #tpu.memory_space<vmem>>, vector<10x256xf32>
    %c0_19 = arith.constant 0 : index
    %c0_20 = arith.constant 0 : index
    %27 = vector.load %arg4[%c0_19, %c0_20] : memref<10x15xf32, #tpu.memory_space<vmem>>, vector<10x1xf32>
    %28 = vector.broadcast %27 : vector<10x1xf32> to vector<10x256xf32>
    %29 = arith.mulf %28, %26 : vector<10x256xf32>
    %30 = vector.broadcast %25 : vector<10x1xf32> to vector<10x256xf32>
    %31 = arith.addf %30, %29 : vector<10x256xf32>
    %c1_21 = arith.constant 1 : index
    %c0_22 = arith.constant 0 : index
    %32 = tpu.strided_load %arg9[%c1_21, %c0_22] {strides = array<i32: 0, 1>} : memref<15x256xf32, #tpu.memory_space<vmem>>, vector<10x256xf32>
    %c0_23 = arith.constant 0 : index
    %c1_24 = arith.constant 1 : index
    %33 = vector.load %arg4[%c0_23, %c1_24] : memref<10x15xf32, #tpu.memory_space<vmem>>, vector<10x1xf32>
    %34 = vector.broadcast %33 : vector<10x1xf32> to vector<10x256xf32>
    %35 = arith.mulf %34, %32 : vector<10x256xf32>
    %36 = arith.addf %31, %35 : vector<10x256xf32>
    %c2_25 = arith.constant 2 : index
    %c0_26 = arith.constant 0 : index
    %37 = tpu.strided_load %arg9[%c2_25, %c0_26] {strides = array<i32: 0, 1>} : memref<15x256xf32, #tpu.memory_space<vmem>>, vector<10x256xf32>
    %c0_27 = arith.constant 0 : index
    %c2_28 = arith.constant 2 : index
    %38 = vector.load %arg4[%c0_27, %c2_28] : memref<10x15xf32, #tpu.memory_space<vmem>>, vector<10x1xf32>
    %39 = vector.broadcast %38 : vector<10x1xf32> to vector<10x256xf32>
    %40 = arith.mulf %39, %37 : vector<10x256xf32>
    %41 = arith.addf %36, %40 : vector<10x256xf32>
    %c3 = arith.constant 3 : index
    %c0_29 = arith.constant 0 : index
    %42 = tpu.strided_load %arg9[%c3, %c0_29] {strides = array<i32: 0, 1>} : memref<15x256xf32, #tpu.memory_space<vmem>>, vector<10x256xf32>
    %c0_30 = arith.constant 0 : index
    %c3_31 = arith.constant 3 : index
    %43 = vector.load %arg4[%c0_30, %c3_31] : memref<10x15xf32, #tpu.memory_space<vmem>>, vector<10x1xf32>
    %44 = vector.broadcast %43 : vector<10x1xf32> to vector<10x256xf32>
    %45 = arith.mulf %44, %42 : vector<10x256xf32>
    %46 = arith.addf %41, %45 : vector<10x256xf32>
    %c4 = arith.constant 4 : index
    %c0_32 = arith.constant 0 : index
    %47 = tpu.strided_load %arg9[%c4, %c0_32] {strides = array<i32: 0, 1>} : memref<15x256xf32, #tpu.memory_space<vmem>>, vector<10x256xf32>
    %c0_33 = arith.constant 0 : index
    %c4_34 = arith.constant 4 : index
    %48 = vector.load %arg4[%c0_33, %c4_34] : memref<10x15xf32, #tpu.memory_space<vmem>>, vector<10x1xf32>
    %49 = vector.broadcast %48 : vector<10x1xf32> to vector<10x256xf32>
    %50 = arith.mulf %49, %47 : vector<10x256xf32>
    %51 = arith.addf %46, %50 : vector<10x256xf32>
    %c5 = arith.constant 5 : index
    %c0_35 = arith.constant 0 : index
    %52 = tpu.strided_load %arg9[%c5, %c0_35] {strides = array<i32: 0, 1>} : memref<15x256xf32, #tpu.memory_space<vmem>>, vector<10x256xf32>
    %c0_36 = arith.constant 0 : index
    %c5_37 = arith.constant 5 : index
    %53 = vector.load %arg4[%c0_36, %c5_37] : memref<10x15xf32, #tpu.memory_space<vmem>>, vector<10x1xf32>
    %54 = vector.broadcast %53 : vector<10x1xf32> to vector<10x256xf32>
    %55 = arith.mulf %54, %52 : vector<10x256xf32>
    %56 = arith.addf %51, %55 : vector<10x256xf32>
    %c6 = arith.constant 6 : index
    %c0_38 = arith.constant 0 : index
    %57 = tpu.strided_load %arg9[%c6, %c0_38] {strides = array<i32: 0, 1>} : memref<15x256xf32, #tpu.memory_space<vmem>>, vector<10x256xf32>
    %c0_39 = arith.constant 0 : index
    %c6_40 = arith.constant 6 : index
    %58 = vector.load %arg4[%c0_39, %c6_40] : memref<10x15xf32, #tpu.memory_space<vmem>>, vector<10x1xf32>
    %59 = vector.broadcast %58 : vector<10x1xf32> to vector<10x256xf32>
    %60 = arith.mulf %59, %57 : vector<10x256xf32>
    %61 = arith.addf %56, %60 : vector<10x256xf32>
    %c7 = arith.constant 7 : index
    %c0_41 = arith.constant 0 : index
    %62 = tpu.strided_load %arg9[%c7, %c0_41] {strides = array<i32: 0, 1>} : memref<15x256xf32, #tpu.memory_space<vmem>>, vector<10x256xf32>
    %c0_42 = arith.constant 0 : index
    %c7_43 = arith.constant 7 : index
    %63 = vector.load %arg4[%c0_42, %c7_43] : memref<10x15xf32, #tpu.memory_space<vmem>>, vector<10x1xf32>
    %64 = vector.broadcast %63 : vector<10x1xf32> to vector<10x256xf32>
    %65 = arith.mulf %64, %62 : vector<10x256xf32>
    %66 = arith.addf %61, %65 : vector<10x256xf32>
    %c8 = arith.constant 8 : index
    %c0_44 = arith.constant 0 : index
    %67 = tpu.strided_load %arg9[%c8, %c0_44] {strides = array<i32: 0, 1>} : memref<15x256xf32, #tpu.memory_space<vmem>>, vector<10x256xf32>
    %c0_45 = arith.constant 0 : index
    %c8_46 = arith.constant 8 : index
    %68 = vector.load %arg4[%c0_45, %c8_46] : memref<10x15xf32, #tpu.memory_space<vmem>>, vector<10x1xf32>
    %69 = vector.broadcast %68 : vector<10x1xf32> to vector<10x256xf32>
    %70 = arith.mulf %69, %67 : vector<10x256xf32>
    %71 = arith.addf %66, %70 : vector<10x256xf32>
    %c9 = arith.constant 9 : index
    %c0_47 = arith.constant 0 : index
    %72 = tpu.strided_load %arg9[%c9, %c0_47] {strides = array<i32: 0, 1>} : memref<15x256xf32, #tpu.memory_space<vmem>>, vector<10x256xf32>
    %c0_48 = arith.constant 0 : index
    %c9_49 = arith.constant 9 : index
    %73 = vector.load %arg4[%c0_48, %c9_49] : memref<10x15xf32, #tpu.memory_space<vmem>>, vector<10x1xf32>
    %74 = vector.broadcast %73 : vector<10x1xf32> to vector<10x256xf32>
    %75 = arith.mulf %74, %72 : vector<10x256xf32>
    %76 = arith.addf %71, %75 : vector<10x256xf32>
    %c10 = arith.constant 10 : index
    %c0_50 = arith.constant 0 : index
    %77 = tpu.strided_load %arg9[%c10, %c0_50] {strides = array<i32: 0, 1>} : memref<15x256xf32, #tpu.memory_space<vmem>>, vector<10x256xf32>
    %c0_51 = arith.constant 0 : index
    %c10_52 = arith.constant 10 : index
    %78 = vector.load %arg4[%c0_51, %c10_52] : memref<10x15xf32, #tpu.memory_space<vmem>>, vector<10x1xf32>
    %79 = vector.broadcast %78 : vector<10x1xf32> to vector<10x256xf32>
    %80 = arith.mulf %79, %77 : vector<10x256xf32>
    %81 = arith.addf %76, %80 : vector<10x256xf32>
    %c11 = arith.constant 11 : index
    %c0_53 = arith.constant 0 : index
    %82 = tpu.strided_load %arg9[%c11, %c0_53] {strides = array<i32: 0, 1>} : memref<15x256xf32, #tpu.memory_space<vmem>>, vector<10x256xf32>
    %c0_54 = arith.constant 0 : index
    %c11_55 = arith.constant 11 : index
    %83 = vector.load %arg4[%c0_54, %c11_55] : memref<10x15xf32, #tpu.memory_space<vmem>>, vector<10x1xf32>
    %84 = vector.broadcast %83 : vector<10x1xf32> to vector<10x256xf32>
    %85 = arith.mulf %84, %82 : vector<10x256xf32>
    %86 = arith.addf %81, %85 : vector<10x256xf32>
    %c12 = arith.constant 12 : index
    %c0_56 = arith.constant 0 : index
    %87 = tpu.strided_load %arg9[%c12, %c0_56] {strides = array<i32: 0, 1>} : memref<15x256xf32, #tpu.memory_space<vmem>>, vector<10x256xf32>
    %c0_57 = arith.constant 0 : index
    %c12_58 = arith.constant 12 : index
    %88 = vector.load %arg4[%c0_57, %c12_58] : memref<10x15xf32, #tpu.memory_space<vmem>>, vector<10x1xf32>
    %89 = vector.broadcast %88 : vector<10x1xf32> to vector<10x256xf32>
    %90 = arith.mulf %89, %87 : vector<10x256xf32>
    %91 = arith.addf %86, %90 : vector<10x256xf32>
    %c13 = arith.constant 13 : index
    %c0_59 = arith.constant 0 : index
    %92 = tpu.strided_load %arg9[%c13, %c0_59] {strides = array<i32: 0, 1>} : memref<15x256xf32, #tpu.memory_space<vmem>>, vector<10x256xf32>
    %c0_60 = arith.constant 0 : index
    %c13_61 = arith.constant 13 : index
    %93 = vector.load %arg4[%c0_60, %c13_61] : memref<10x15xf32, #tpu.memory_space<vmem>>, vector<10x1xf32>
    %94 = vector.broadcast %93 : vector<10x1xf32> to vector<10x256xf32>
    %95 = arith.mulf %94, %92 : vector<10x256xf32>
    %96 = arith.addf %91, %95 : vector<10x256xf32>
    %c14 = arith.constant 14 : index
    %c0_62 = arith.constant 0 : index
    %97 = tpu.strided_load %arg9[%c14, %c0_62] {strides = array<i32: 0, 1>} : memref<15x256xf32, #tpu.memory_space<vmem>>, vector<10x256xf32>
    %c0_63 = arith.constant 0 : index
    %c14_64 = arith.constant 14 : index
    %98 = vector.load %arg4[%c0_63, %c14_64] : memref<10x15xf32, #tpu.memory_space<vmem>>, vector<10x1xf32>
    %99 = vector.broadcast %98 : vector<10x1xf32> to vector<10x256xf32>
    %100 = arith.mulf %99, %97 : vector<10x256xf32>
    %101 = arith.addf %96, %100 : vector<10x256xf32>
    %cst_65 = arith.constant 5.000000e-01 : f32
    %102 = vector.broadcast %cst_65 : f32 to vector<10x256xf32>
    %103 = arith.mulf %102, %101 : vector<10x256xf32>
    %104 = math.tanh %103 : vector<10x256xf32>
    %cst_66 = arith.constant 5.000000e-01 : f32
    %105 = vector.broadcast %cst_66 : f32 to vector<10x256xf32>
    %106 = arith.mulf %105, %104 : vector<10x256xf32>
    %cst_67 = arith.constant 5.000000e-01 : f32
    %107 = vector.broadcast %cst_67 : f32 to vector<10x256xf32>
    %108 = arith.addf %106, %107 : vector<10x256xf32>
    %c0_68 = arith.constant 0 : index
    %c0_69 = arith.constant 0 : index
    %109 = vector.load %arg6[%c0_68, %c0_69] : memref<10x1xf32, #tpu.memory_space<vmem>>, vector<10x1xf32>
    %110 = vector.broadcast %109 : vector<10x1xf32> to vector<10x256xf32>
    %111 = arith.mulf %110, %108 : vector<10x256xf32>
    %cst_70 = arith.constant dense<0.000000e+00> : vector<256xf32>
    %112 = vector.multi_reduction <add>, %111, %cst_70 [0] : vector<10x256xf32> to vector<256xf32>
    %113 = vector.shape_cast %112 : vector<256xf32> to vector<1x256xf32>
    %c0_71 = arith.constant 0 : index
    %c0_72 = arith.constant 0 : index
    %114 = vector.load %arg7[%c0_71, %c0_72] : memref<1x1xf32, #tpu.memory_space<vmem>>, vector<1x1xf32>
    %115 = vector.broadcast %114 : vector<1x1xf32> to vector<1x256xf32>
    %116 = arith.addf %113, %115 : vector<1x256xf32>
    %c0_73 = arith.constant 0 : index
    %c0_74 = arith.constant 0 : index
    %117 = vector.load %arg8[%c0_73, %c0_74] : memref<1x256xf32, #tpu.memory_space<vmem>>, vector<1x256xf32>
    tpu.vector_store %arg8[%c0_73, %c0_74], %116 {strides = array<i32>} : memref<1x256xf32, #tpu.memory_space<vmem>>, vector<1x256xf32>,
    return
  }
  func.func @transform_0(%arg0: i32) -> (i32, i32) {
    %c0_i32 = arith.constant 0 : i32
    %c0_i32_0 = arith.constant 0 : i32
    return %c0_i32, %arg0 : i32, i32
  }
  func.func @transform_1(%arg0: i32) -> (i32, i32) {
    %c0_i32 = arith.constant 0 : i32
    %c0_i32_0 = arith.constant 0 : i32
    %c0_i32_1 = arith.constant 0 : i32
    return %c0_i32, %c0_i32_0 : i32, i32
  }
  func.func @transform_2(%arg0: i32) -> (i32, i32) {
    %c0_i32 = arith.constant 0 : i32
    %c0_i32_0 = arith.constant 0 : i32
    %c0_i32_1 = arith.constant 0 : i32
    return %c0_i32, %c0_i32_0 : i32, i32
  }
  func.func @transform_3(%arg0: i32) -> (i32, i32) {
    %c0_i32 = arith.constant 0 : i32
    %c0_i32_0 = arith.constant 0 : i32
    %c0_i32_1 = arith.constant 0 : i32
    return %c0_i32, %c0_i32_0 : i32, i32
  }
  func.func @transform_4(%arg0: i32) -> (i32, i32) {
    %c0_i32 = arith.constant 0 : i32
    %c0_i32_0 = arith.constant 0 : i32
    %c0_i32_1 = arith.constant 0 : i32
    return %c0_i32, %c0_i32_0 : i32, i32
  }
  func.func @transform_5(%arg0: i32) -> (i32, i32) {
    %c0_i32 = arith.constant 0 : i32
    %c0_i32_0 = arith.constant 0 : i32
    %c0_i32_1 = arith.constant 0 : i32
    return %c0_i32, %c0_i32_0 : i32, i32
  }
  func.func @transform_6(%arg0: i32) -> (i32, i32) {
    %c0_i32 = arith.constant 0 : i32
    %c0_i32_0 = arith.constant 0 : i32
    %c0_i32_1 = arith.constant 0 : i32
    return %c0_i32, %c0_i32_0 : i32, i32
  }
  func.func @transform_7(%arg0: i32) -> (i32, i32) {
    %c0_i32 = arith.constant 0 : i32
    %c0_i32_0 = arith.constant 0 : i32
    return %c0_i32, %arg0 : i32, i32
  }
}

module attributes {stable_mosaic.version = 11 : i64} {
  func.func @mlp_kernel(%arg0: i32, %arg1: memref<3x256xf32, #tpu.memory_space<vmem>>, %arg2: memref<15x3xf32, #tpu.memory_space<vmem>>, %arg3: memref<15x1xf32, #tpu.memory_space<vmem>>, %arg4: memref<10x15xf32, #tpu.memory_space<vmem>>, %arg5: memref<10x1xf32, #tpu.memory_space<vmem>>, %arg6: memref<10x1xf32, #tpu.memory_space<vmem>>, %arg7: memref<1x1xf32, #tpu.memory_space<vmem>>, %arg8: memref<1x256xf32, #tpu.memory_space<vmem>>, %arg9: memref<15x256xf32, #tpu.memory_space<vmem>>) attributes {dimension_semantics = [#tpu.dimension_semantics<parallel>], iteration_bounds = array<i64: 2>, scalar_prefetch = 0 : i64, scratch_operands = 1 : i64, tpu.core_type = #tpu.core_type<tc>, window_params = [{transform_indices = @transform_0, window_bounds = array<i64: 3, 256>}, {pipeline_mode = #tpu.pipeline_mode<synchronous>, transform_indices = @transform_1, window_bounds = array<i64: 15, 3>}, {pipeline_mode = #tpu.pipeline_mode<synchronous>, transform_indices = @transform_2, window_bounds = array<i64: 15, 1>}, {pipeline_mode = #tpu.pipeline_mode<synchronous>, transform_indices = @transform_3, window_bounds = array<i64: 10, 15>}, {pipeline_mode = #tpu.pipeline_mode<synchronous>, transform_indices = @transform_4, window_bounds = array<i64: 10, 1>}, {pipeline_mode = #tpu.pipeline_mode<synchronous>, transform_indices = @transform_5, window_bounds = array<i64: 10, 1>}, {pipeline_mode = #tpu.pipeline_mode<synchronous>, transform_indices = @transform_6, window_bounds = array<i64: 1, 1>}, {transform_indices = @transform_7, window_bounds = array<i64: 1, 256>}]} {
    %c0 = arith.constant 0 : index
    %c0_0 = arith.constant 0 : index
    %0 = vector.load %arg3[%c0, %c0_0] : memref<15x1xf32, #tpu.memory_space<vmem>>, vector<15x1xf32>
    %c0_1 = arith.constant 0 : index
    %c0_2 = arith.constant 0 : index
    %1 = vector.load %arg1[%c0_1, %c0_2] : memref<3x256xf32, #tpu.memory_space<vmem>>, vector<1x256xf32>
    %c0_3 = arith.constant 0 : index
    %c0_4 = arith.constant 0 : index
    %2 = vector.load %arg2[%c0_3, %c0_4] : memref<15x3xf32, #tpu.memory_space<vmem>>, vector<15x1xf32>
    %3 = vector.broadcast %2 : vector<15x1xf32> to vector<15x256xf32>
    %4 = vector.broadcast %1 : vector<1x256xf32> to vector<15x256xf32>
    %5 = arith.mulf %3, %4 : vector<15x256xf32>
    %6 = vector.broadcast %0 : vector<15x1xf32> to vector<15x256xf32>
    %7 = arith.addf %6, %5 : vector<15x256xf32>
    %c1 = arith.constant 1 : index
    %c0_5 = arith.constant 0 : index
    %8 = vector.load %arg1[%c1, %c0_5] : memref<3x256xf32, #tpu.memory_space<vmem>>, vector<1x256xf32>
    %c0_6 = arith.constant 0 : index
    %c1_7 = arith.constant 1 : index
    %9 = vector.load %arg2[%c0_6, %c1_7] : memref<15x3xf32, #tpu.memory_space<vmem>>, vector<15x1xf32>
    %10 = vector.broadcast %9 : vector<15x1xf32> to vector<15x256xf32>
    %11 = vector.broadcast %8 : vector<1x256xf32> to vector<15x256xf32>
    %12 = arith.mulf %10, %11 : vector<15x256xf32>
    %13 = arith.addf %7, %12 : vector<15x256xf32>
    %c2 = arith.constant 2 : index
    %c0_8 = arith.constant 0 : index
    %14 = vector.load %arg1[%c2, %c0_8] : memref<3x256xf32, #tpu.memory_space<vmem>>, vector<1x256xf32>
    %c0_9 = arith.constant 0 : index
    %c2_10 = arith.constant 2 : index
    %15 = vector.load %arg2[%c0_9, %c2_10] : memref<15x3xf32, #tpu.memory_space<vmem>>, vector<15x1xf32>
    %16 = vector.broadcast %15 : vector<15x1xf32> to vector<15x256xf32>
    %17 = vector.broadcast %14 : vector<1x256xf32> to vector<15x256xf32>
    %18 = arith.mulf %16, %17 : vector<15x256xf32>
    %19 = arith.addf %13, %18 : vector<15x256xf32>
    %cst = arith.constant 5.000000e-01 : f32
    %20 = vector.broadcast %cst : f32 to vector<15x256xf32>
    %21 = arith.mulf %20, %19 : vector<15x256xf32>
    %22 = math.tanh %21 : vector<15x256xf32>
    %cst_11 = arith.constant 5.000000e-01 : f32
    %23 = vector.broadcast %cst_11 : f32 to vector<15x256xf32>
    %24 = arith.mulf %23, %22 : vector<15x256xf32>
    %cst_12 = arith.constant 5.000000e-01 : f32
    %25 = vector.broadcast %cst_12 : f32 to vector<15x256xf32>
    %26 = arith.addf %24, %25 : vector<15x256xf32>
    %c0_13 = arith.constant 0 : index
    %c0_14 = arith.constant 0 : index
    %27 = vector.load %arg9[%c0_13, %c0_14] : memref<15x256xf32, #tpu.memory_space<vmem>>, vector<15x256xf32>
    tpu.vector_store %arg9[%c0_13, %c0_14], %26 {strides = array<i32>} : memref<15x256xf32, #tpu.memory_space<vmem>>, vector<15x256xf32>,
    %c0_15 = arith.constant 0 : index
    %c0_16 = arith.constant 0 : index
    %28 = vector.load %arg5[%c0_15, %c0_16] : memref<10x1xf32, #tpu.memory_space<vmem>>, vector<10x1xf32>
    %c0_17 = arith.constant 0 : index
    %c0_18 = arith.constant 0 : index
    %29 = vector.load %arg9[%c0_17, %c0_18] : memref<15x256xf32, #tpu.memory_space<vmem>>, vector<1x256xf32>
    %c0_19 = arith.constant 0 : index
    %c0_20 = arith.constant 0 : index
    %30 = vector.load %arg4[%c0_19, %c0_20] : memref<10x15xf32, #tpu.memory_space<vmem>>, vector<10x1xf32>
    %31 = vector.broadcast %30 : vector<10x1xf32> to vector<10x256xf32>
    %32 = vector.broadcast %29 : vector<1x256xf32> to vector<10x256xf32>
    %33 = arith.mulf %31, %32 : vector<10x256xf32>
    %34 = vector.broadcast %28 : vector<10x1xf32> to vector<10x256xf32>
    %35 = arith.addf %34, %33 : vector<10x256xf32>
    %c1_21 = arith.constant 1 : index
    %c0_22 = arith.constant 0 : index
    %36 = vector.load %arg9[%c1_21, %c0_22] : memref<15x256xf32, #tpu.memory_space<vmem>>, vector<1x256xf32>
    %c0_23 = arith.constant 0 : index
    %c1_24 = arith.constant 1 : index
    %37 = vector.load %arg4[%c0_23, %c1_24] : memref<10x15xf32, #tpu.memory_space<vmem>>, vector<10x1xf32>
    %38 = vector.broadcast %37 : vector<10x1xf32> to vector<10x256xf32>
    %39 = vector.broadcast %36 : vector<1x256xf32> to vector<10x256xf32>
    %40 = arith.mulf %38, %39 : vector<10x256xf32>
    %41 = arith.addf %35, %40 : vector<10x256xf32>
    %c2_25 = arith.constant 2 : index
    %c0_26 = arith.constant 0 : index
    %42 = vector.load %arg9[%c2_25, %c0_26] : memref<15x256xf32, #tpu.memory_space<vmem>>, vector<1x256xf32>
    %c0_27 = arith.constant 0 : index
    %c2_28 = arith.constant 2 : index
    %43 = vector.load %arg4[%c0_27, %c2_28] : memref<10x15xf32, #tpu.memory_space<vmem>>, vector<10x1xf32>
    %44 = vector.broadcast %43 : vector<10x1xf32> to vector<10x256xf32>
    %45 = vector.broadcast %42 : vector<1x256xf32> to vector<10x256xf32>
    %46 = arith.mulf %44, %45 : vector<10x256xf32>
    %47 = arith.addf %41, %46 : vector<10x256xf32>
    %c3 = arith.constant 3 : index
    %c0_29 = arith.constant 0 : index
    %48 = vector.load %arg9[%c3, %c0_29] : memref<15x256xf32, #tpu.memory_space<vmem>>, vector<1x256xf32>
    %c0_30 = arith.constant 0 : index
    %c3_31 = arith.constant 3 : index
    %49 = vector.load %arg4[%c0_30, %c3_31] : memref<10x15xf32, #tpu.memory_space<vmem>>, vector<10x1xf32>
    %50 = vector.broadcast %49 : vector<10x1xf32> to vector<10x256xf32>
    %51 = vector.broadcast %48 : vector<1x256xf32> to vector<10x256xf32>
    %52 = arith.mulf %50, %51 : vector<10x256xf32>
    %53 = arith.addf %47, %52 : vector<10x256xf32>
    %c4 = arith.constant 4 : index
    %c0_32 = arith.constant 0 : index
    %54 = vector.load %arg9[%c4, %c0_32] : memref<15x256xf32, #tpu.memory_space<vmem>>, vector<1x256xf32>
    %c0_33 = arith.constant 0 : index
    %c4_34 = arith.constant 4 : index
    %55 = vector.load %arg4[%c0_33, %c4_34] : memref<10x15xf32, #tpu.memory_space<vmem>>, vector<10x1xf32>
    %56 = vector.broadcast %55 : vector<10x1xf32> to vector<10x256xf32>
    %57 = vector.broadcast %54 : vector<1x256xf32> to vector<10x256xf32>
    %58 = arith.mulf %56, %57 : vector<10x256xf32>
    %59 = arith.addf %53, %58 : vector<10x256xf32>
    %c5 = arith.constant 5 : index
    %c0_35 = arith.constant 0 : index
    %60 = vector.load %arg9[%c5, %c0_35] : memref<15x256xf32, #tpu.memory_space<vmem>>, vector<1x256xf32>
    %c0_36 = arith.constant 0 : index
    %c5_37 = arith.constant 5 : index
    %61 = vector.load %arg4[%c0_36, %c5_37] : memref<10x15xf32, #tpu.memory_space<vmem>>, vector<10x1xf32>
    %62 = vector.broadcast %61 : vector<10x1xf32> to vector<10x256xf32>
    %63 = vector.broadcast %60 : vector<1x256xf32> to vector<10x256xf32>
    %64 = arith.mulf %62, %63 : vector<10x256xf32>
    %65 = arith.addf %59, %64 : vector<10x256xf32>
    %c6 = arith.constant 6 : index
    %c0_38 = arith.constant 0 : index
    %66 = vector.load %arg9[%c6, %c0_38] : memref<15x256xf32, #tpu.memory_space<vmem>>, vector<1x256xf32>
    %c0_39 = arith.constant 0 : index
    %c6_40 = arith.constant 6 : index
    %67 = vector.load %arg4[%c0_39, %c6_40] : memref<10x15xf32, #tpu.memory_space<vmem>>, vector<10x1xf32>
    %68 = vector.broadcast %67 : vector<10x1xf32> to vector<10x256xf32>
    %69 = vector.broadcast %66 : vector<1x256xf32> to vector<10x256xf32>
    %70 = arith.mulf %68, %69 : vector<10x256xf32>
    %71 = arith.addf %65, %70 : vector<10x256xf32>
    %c7 = arith.constant 7 : index
    %c0_41 = arith.constant 0 : index
    %72 = vector.load %arg9[%c7, %c0_41] : memref<15x256xf32, #tpu.memory_space<vmem>>, vector<1x256xf32>
    %c0_42 = arith.constant 0 : index
    %c7_43 = arith.constant 7 : index
    %73 = vector.load %arg4[%c0_42, %c7_43] : memref<10x15xf32, #tpu.memory_space<vmem>>, vector<10x1xf32>
    %74 = vector.broadcast %73 : vector<10x1xf32> to vector<10x256xf32>
    %75 = vector.broadcast %72 : vector<1x256xf32> to vector<10x256xf32>
    %76 = arith.mulf %74, %75 : vector<10x256xf32>
    %77 = arith.addf %71, %76 : vector<10x256xf32>
    %c8 = arith.constant 8 : index
    %c0_44 = arith.constant 0 : index
    %78 = vector.load %arg9[%c8, %c0_44] : memref<15x256xf32, #tpu.memory_space<vmem>>, vector<1x256xf32>
    %c0_45 = arith.constant 0 : index
    %c8_46 = arith.constant 8 : index
    %79 = vector.load %arg4[%c0_45, %c8_46] : memref<10x15xf32, #tpu.memory_space<vmem>>, vector<10x1xf32>
    %80 = vector.broadcast %79 : vector<10x1xf32> to vector<10x256xf32>
    %81 = vector.broadcast %78 : vector<1x256xf32> to vector<10x256xf32>
    %82 = arith.mulf %80, %81 : vector<10x256xf32>
    %83 = arith.addf %77, %82 : vector<10x256xf32>
    %c9 = arith.constant 9 : index
    %c0_47 = arith.constant 0 : index
    %84 = vector.load %arg9[%c9, %c0_47] : memref<15x256xf32, #tpu.memory_space<vmem>>, vector<1x256xf32>
    %c0_48 = arith.constant 0 : index
    %c9_49 = arith.constant 9 : index
    %85 = vector.load %arg4[%c0_48, %c9_49] : memref<10x15xf32, #tpu.memory_space<vmem>>, vector<10x1xf32>
    %86 = vector.broadcast %85 : vector<10x1xf32> to vector<10x256xf32>
    %87 = vector.broadcast %84 : vector<1x256xf32> to vector<10x256xf32>
    %88 = arith.mulf %86, %87 : vector<10x256xf32>
    %89 = arith.addf %83, %88 : vector<10x256xf32>
    %c10 = arith.constant 10 : index
    %c0_50 = arith.constant 0 : index
    %90 = vector.load %arg9[%c10, %c0_50] : memref<15x256xf32, #tpu.memory_space<vmem>>, vector<1x256xf32>
    %c0_51 = arith.constant 0 : index
    %c10_52 = arith.constant 10 : index
    %91 = vector.load %arg4[%c0_51, %c10_52] : memref<10x15xf32, #tpu.memory_space<vmem>>, vector<10x1xf32>
    %92 = vector.broadcast %91 : vector<10x1xf32> to vector<10x256xf32>
    %93 = vector.broadcast %90 : vector<1x256xf32> to vector<10x256xf32>
    %94 = arith.mulf %92, %93 : vector<10x256xf32>
    %95 = arith.addf %89, %94 : vector<10x256xf32>
    %c11 = arith.constant 11 : index
    %c0_53 = arith.constant 0 : index
    %96 = vector.load %arg9[%c11, %c0_53] : memref<15x256xf32, #tpu.memory_space<vmem>>, vector<1x256xf32>
    %c0_54 = arith.constant 0 : index
    %c11_55 = arith.constant 11 : index
    %97 = vector.load %arg4[%c0_54, %c11_55] : memref<10x15xf32, #tpu.memory_space<vmem>>, vector<10x1xf32>
    %98 = vector.broadcast %97 : vector<10x1xf32> to vector<10x256xf32>
    %99 = vector.broadcast %96 : vector<1x256xf32> to vector<10x256xf32>
    %100 = arith.mulf %98, %99 : vector<10x256xf32>
    %101 = arith.addf %95, %100 : vector<10x256xf32>
    %c12 = arith.constant 12 : index
    %c0_56 = arith.constant 0 : index
    %102 = vector.load %arg9[%c12, %c0_56] : memref<15x256xf32, #tpu.memory_space<vmem>>, vector<1x256xf32>
    %c0_57 = arith.constant 0 : index
    %c12_58 = arith.constant 12 : index
    %103 = vector.load %arg4[%c0_57, %c12_58] : memref<10x15xf32, #tpu.memory_space<vmem>>, vector<10x1xf32>
    %104 = vector.broadcast %103 : vector<10x1xf32> to vector<10x256xf32>
    %105 = vector.broadcast %102 : vector<1x256xf32> to vector<10x256xf32>
    %106 = arith.mulf %104, %105 : vector<10x256xf32>
    %107 = arith.addf %101, %106 : vector<10x256xf32>
    %c13 = arith.constant 13 : index
    %c0_59 = arith.constant 0 : index
    %108 = vector.load %arg9[%c13, %c0_59] : memref<15x256xf32, #tpu.memory_space<vmem>>, vector<1x256xf32>
    %c0_60 = arith.constant 0 : index
    %c13_61 = arith.constant 13 : index
    %109 = vector.load %arg4[%c0_60, %c13_61] : memref<10x15xf32, #tpu.memory_space<vmem>>, vector<10x1xf32>
    %110 = vector.broadcast %109 : vector<10x1xf32> to vector<10x256xf32>
    %111 = vector.broadcast %108 : vector<1x256xf32> to vector<10x256xf32>
    %112 = arith.mulf %110, %111 : vector<10x256xf32>
    %113 = arith.addf %107, %112 : vector<10x256xf32>
    %c14 = arith.constant 14 : index
    %c0_62 = arith.constant 0 : index
    %114 = vector.load %arg9[%c14, %c0_62] : memref<15x256xf32, #tpu.memory_space<vmem>>, vector<1x256xf32>
    %c0_63 = arith.constant 0 : index
    %c14_64 = arith.constant 14 : index
    %115 = vector.load %arg4[%c0_63, %c14_64] : memref<10x15xf32, #tpu.memory_space<vmem>>, vector<10x1xf32>
    %116 = vector.broadcast %115 : vector<10x1xf32> to vector<10x256xf32>
    %117 = vector.broadcast %114 : vector<1x256xf32> to vector<10x256xf32>
    %118 = arith.mulf %116, %117 : vector<10x256xf32>
    %119 = arith.addf %113, %118 : vector<10x256xf32>
    %cst_65 = arith.constant 5.000000e-01 : f32
    %120 = vector.broadcast %cst_65 : f32 to vector<10x256xf32>
    %121 = arith.mulf %120, %119 : vector<10x256xf32>
    %122 = math.tanh %121 : vector<10x256xf32>
    %cst_66 = arith.constant 5.000000e-01 : f32
    %123 = vector.broadcast %cst_66 : f32 to vector<10x256xf32>
    %124 = arith.mulf %123, %122 : vector<10x256xf32>
    %cst_67 = arith.constant 5.000000e-01 : f32
    %125 = vector.broadcast %cst_67 : f32 to vector<10x256xf32>
    %126 = arith.addf %124, %125 : vector<10x256xf32>
    %c0_68 = arith.constant 0 : index
    %c0_69 = arith.constant 0 : index
    %127 = vector.load %arg6[%c0_68, %c0_69] : memref<10x1xf32, #tpu.memory_space<vmem>>, vector<10x1xf32>
    %128 = vector.broadcast %127 : vector<10x1xf32> to vector<10x256xf32>
    %129 = arith.mulf %128, %126 : vector<10x256xf32>
    %cst_70 = arith.constant dense<0.000000e+00> : vector<256xf32>
    %130 = vector.multi_reduction <add>, %129, %cst_70 [0] : vector<10x256xf32> to vector<256xf32>
    %131 = vector.shape_cast %130 : vector<256xf32> to vector<1x256xf32>
    %c0_71 = arith.constant 0 : index
    %c0_72 = arith.constant 0 : index
    %132 = vector.load %arg7[%c0_71, %c0_72] : memref<1x1xf32, #tpu.memory_space<vmem>>, vector<1x1xf32>
    %133 = vector.broadcast %132 : vector<1x1xf32> to vector<1x256xf32>
    %134 = arith.addf %131, %133 : vector<1x256xf32>
    %c0_73 = arith.constant 0 : index
    %c0_74 = arith.constant 0 : index
    %135 = vector.load %arg8[%c0_73, %c0_74] : memref<1x256xf32, #tpu.memory_space<vmem>>, vector<1x256xf32>
    tpu.vector_store %arg8[%c0_73, %c0_74], %134 {strides = array<i32>} : memref<1x256xf32, #tpu.memory_space<vmem>>, vector<1x256xf32>,
    return
  }
  func.func @transform_0(%arg0: i32) -> (i32, i32) {
    %c0_i32 = arith.constant 0 : i32
    %c0_i32_0 = arith.constant 0 : i32
    return %c0_i32, %arg0 : i32, i32
  }
  func.func @transform_1(%arg0: i32) -> (i32, i32) {
    %c0_i32 = arith.constant 0 : i32
    %c0_i32_0 = arith.constant 0 : i32
    %c0_i32_1 = arith.constant 0 : i32
    return %c0_i32, %c0_i32_0 : i32, i32
  }
  func.func @transform_2(%arg0: i32) -> (i32, i32) {
    %c0_i32 = arith.constant 0 : i32
    %c0_i32_0 = arith.constant 0 : i32
    %c0_i32_1 = arith.constant 0 : i32
    return %c0_i32, %c0_i32_0 : i32, i32
  }
  func.func @transform_3(%arg0: i32) -> (i32, i32) {
    %c0_i32 = arith.constant 0 : i32
    %c0_i32_0 = arith.constant 0 : i32
    %c0_i32_1 = arith.constant 0 : i32
    return %c0_i32, %c0_i32_0 : i32, i32
  }
  func.func @transform_4(%arg0: i32) -> (i32, i32) {
    %c0_i32 = arith.constant 0 : i32
    %c0_i32_0 = arith.constant 0 : i32
    %c0_i32_1 = arith.constant 0 : i32
    return %c0_i32, %c0_i32_0 : i32, i32
  }
  func.func @transform_5(%arg0: i32) -> (i32, i32) {
    %c0_i32 = arith.constant 0 : i32
    %c0_i32_0 = arith.constant 0 : i32
    %c0_i32_1 = arith.constant 0 : i32
    return %c0_i32, %c0_i32_0 : i32, i32
  }
  func.func @transform_6(%arg0: i32) -> (i32, i32) {
    %c0_i32 = arith.constant 0 : i32
    %c0_i32_0 = arith.constant 0 : i32
    %c0_i32_1 = arith.constant 0 : i32
    return %c0_i32, %c0_i32_0 : i32, i32
  }
  func.func @transform_7(%arg0: i32) -> (i32, i32) {
    %c0_i32 = arith.constant 0 : i32
    %c0_i32_0 = arith.constant 0 : i32
    return %c0_i32, %arg0 : i32, i32
  }
}

</mosaic_0001>

<llo_original>
// kernel: tpu_custom_call.1
$region0: #{tpu_custom_call.1}
  #allocation0 [shape = 'u32[]', space=smem, size = 0x4, offset = 0x4, fixed_abs, tag = 'smem constant byte address 0x4 - core index']
  #allocation1 [shape = 'u32[72,128]{1,0:T(1,128)}', space=vmem, size = 0x9000, scoped, tag = 'internal scratch']
  #allocation2 [shape = 'f32[15,256]{1,0:T(8,128)}', space=vmem, size = 0x4000, scoped, tag = 'scratch operand']
  #allocation3 [shape = 'f32[1,1]{1,0:T(1,128)S(1)}', space=vmem, size = 0x200, scoped, tag = 'scoped memory for tpu_custom_call.1']
  %s0 = inlined_call_operand.vmem [shape: f32[3,300], index: 0, kind: input, shape index: {}]
  %s1 = inlined_call_operand.vmem [shape: f32[15,3], index: 1, kind: input, shape index: {}]
  %s2 = inlined_call_operand.vmem [shape: f32[15,1], index: 2, kind: input, shape index: {}]
  %s3 = inlined_call_operand.vmem [shape: f32[10,15], index: 3, kind: input, shape index: {}]
  %s4 = inlined_call_operand.vmem [shape: f32[10,1], index: 4, kind: input, shape index: {}]
  %s5 = inlined_call_operand.vmem [shape: f32[10,1], index: 5, kind: input, shape index: {}]
  %s6 = inlined_call_operand.<no memory space> [shape: f32[1,1], index: 6, kind: input, shape index: {}]
  %s7 = inlined_call_operand.hbm [shape: f32[1,300], index: 7, kind: output, shape index: {}]
  %s8 = sld [smem:[#allocation0]]
  $region61: #{tpu_custom_call.1} parent=0
    _
  %s10 = ssub.s32 1, %s8
  %s11 = scalar_select 0, %s10, %s8
  %v12 = vstv %s6
  %13 = vst [vmem:[#allocation3] sm:$0x1] %v12
  $region1: #{tpu_custom_call.1} parent=0
    #allocation4 [shape = 'u8[2048]{0}', space=vmem, size = 0x800, scoped, tag = 'output window, operand 0']
    #allocation5 [shape = 's32[2]{0}', space=sflag, size = 0x8, scoped, tag = 'scoped memory for tpu_custom_call.1']
    %14 = vsyncpa [#allocation5], 0
    %s15 = scalar_lea.sflag [#allocation5], 1
    %16 = vsyncpa %s15, 0
    loop: start=0, step=1, limit=4
    $region2: #{tpu_custom_call.1} parent=1 // loop_pre_header
      _
    $region3: #{tpu_custom_call.1} parent=1 // loop_header
      %s18 = sphi 0, %s22
      %p19 = scmp.ge.s32.totalorder %s18, 4
      %s28 = sphi 0, %s30
      %s31 = sphi 0, %s28
      %s32 = sphi 0, %s31
      %s48 = sphi 0, %s32
      %s52 = sphi 0, %s52
      %s54 = sphi 0, %s52
      %s55 = sphi 0, %s54
      %s69 = sphi 0, %s55
      %s73 = sphi 0, %s73
      %s75 = sphi 0, %s73
      %s76 = sphi 0, %s75
      %s90 = sphi 0, %s76
      %s94 = sphi 0, %s94
      %s96 = sphi 0, %s94
      %s97 = sphi 0, %s96
      %s111 = sphi 0, %s97
      %s115 = sphi 0, %s115
      %s117 = sphi 0, %s115
      %s118 = sphi 0, %s117
      %s132 = sphi 0, %s118
      %s136 = sphi 0, %s136
      %s138 = sphi 0, %s136
      %s139 = sphi 0, %s138
      %s153 = sphi 0, %s139
      %s157 = sphi 0, %s157
      %s159 = sphi 0, %s157
      %s160 = sphi 0, %s159
      %s174 = sphi 0, %s160
      %s180 = sphi 0, %s182
      %s183 = sphi 0, %s180
      %s184 = sphi 0, %s183
      %s200 = sphi 0, %s184
    $region4: #{tpu_custom_call.1} parent=1 // loop_header_branch
      %21 = sbr.rel (%p19) target = $region8
    $region5: #{tpu_custom_call.1} parent=1 // loop_body
      %s23 = ssub.s32 %s18, 1
      %s24 = ssub.s32 %s18, 2
      %s25 = sadd.s32 %s18, 1
      %s26 = ssub.s32 %s18, %s25
      %p27 = scmp.eq.s32.totalorder %s26, 0
      %s29 = sadd.s32 %s28, 1
      %s30 = scalar_select %p27, %s28, %s29
      %p33 = pneg %p27
      %p34 = scmp.eq.s32.totalorder %s18, 1
      %p35 = por %p33, %p34
      %p36 = scmp.ne.s32.totalorder %s28, %s31
      %p37 = scmp.eq.s32.totalorder %s18, 0
      %p38 = por %p36, %p37
      %p39 = scmp.ne.s32.totalorder %s28, %s31
      %p40 = scmp.eq.s32.totalorder %s23, 1
      %p41 = por %p39, %p40
      %p42 = scmp.ne.s32.totalorder %s31, %s32
      %p43 = scmp.eq.s32.totalorder %s23, 0
      %p44 = por %p42, %p43
      %p45 = scmp.ne.s32.totalorder %s31, %s32
      %p46 = scmp.eq.s32.totalorder %s24, 1
      %p47 = por %p45, %p46
      %p49 = scmp.ne.s32.totalorder %s32, %s48
      %p50 = scmp.eq.s32.totalorder %s24, 0
      %p51 = por %p49, %p50
      %s53 = sadd.s32 %s52, 1
      %p56 = scmp.eq.s32.totalorder %s18, 1
      %p57 = scmp.ne.s32.totalorder %s52, %s54
      %p58 = scmp.eq.s32.totalorder %s18, 0
      %p59 = por %p57, %p58
      %p60 = scmp.ne.s32.totalorder %s52, %s54
      %p61 = scmp.eq.s32.totalorder %s23, 1
      %p62 = por %p60, %p61
      %p63 = scmp.ne.s32.totalorder %s54, %s55
      %p64 = scmp.eq.s32.totalorder %s23, 0
      %p65 = por %p63, %p64
      %p66 = scmp.ne.s32.totalorder %s54, %s55
      %p67 = scmp.eq.s32.totalorder %s24, 1
      %p68 = por %p66, %p67
      %p70 = scmp.ne.s32.totalorder %s55, %s69
      %p71 = scmp.eq.s32.totalorder %s24, 0
      %p72 = por %p70, %p71
      %s74 = sadd.s32 %s73, 1
      %p77 = scmp.eq.s32.totalorder %s18, 1
      %p78 = scmp.ne.s32.totalorder %s73, %s75
      %p79 = scmp.eq.s32.totalorder %s18, 0
      %p80 = por %p78, %p79
      %p81 = scmp.ne.s32.totalorder %s73, %s75
      %p82 = scmp.eq.s32.totalorder %s23, 1
      %p83 = por %p81, %p82
      %p84 = scmp.ne.s32.totalorder %s75, %s76
      %p85 = scmp.eq.s32.totalorder %s23, 0
      %p86 = por %p84, %p85
      %p87 = scmp.ne.s32.totalorder %s75, %s76
      %p88 = scmp.eq.s32.totalorder %s24, 1
      %p89 = por %p87, %p88
      %p91 = scmp.ne.s32.totalorder %s76, %s90
      %p92 = scmp.eq.s32.totalorder %s24, 0
      %p93 = por %p91, %p92
      %s95 = sadd.s32 %s94, 1
      %p98 = scmp.eq.s32.totalorder %s18, 1
      %p99 = scmp.ne.s32.totalorder %s94, %s96
      %p100 = scmp.eq.s32.totalorder %s18, 0
      %p101 = por %p99, %p100
      %p102 = scmp.ne.s32.totalorder %s94, %s96
      %p103 = scmp.eq.s32.totalorder %s23, 1
      %p104 = por %p102, %p103
      %p105 = scmp.ne.s32.totalorder %s96, %s97
      %p106 = scmp.eq.s32.totalorder %s23, 0
      %p107 = por %p105, %p106
      %p108 = scmp.ne.s32.totalorder %s96, %s97
      %p109 = scmp.eq.s32.totalorder %s24, 1
      %p110 = por %p108, %p109
      %p112 = scmp.ne.s32.totalorder %s97, %s111
      %p113 = scmp.eq.s32.totalorder %s24, 0
      %p114 = por %p112, %p113
      %s116 = sadd.s32 %s115, 1
      %p119 = scmp.eq.s32.totalorder %s18, 1
      %p120 = scmp.ne.s32.totalorder %s115, %s117
      %p121 = scmp.eq.s32.totalorder %s18, 0
      %p122 = por %p120, %p121
      %p123 = scmp.ne.s32.totalorder %s115, %s117
      %p124 = scmp.eq.s32.totalorder %s23, 1
      %p125 = por %p123, %p124
      %p126 = scmp.ne.s32.totalorder %s117, %s118
      %p127 = scmp.eq.s32.totalorder %s23, 0
      %p128 = por %p126, %p127
      %p129 = scmp.ne.s32.totalorder %s117, %s118
      %p130 = scmp.eq.s32.totalorder %s24, 1
      %p131 = por %p129, %p130
      %p133 = scmp.ne.s32.totalorder %s118, %s132
      %p134 = scmp.eq.s32.totalorder %s24, 0
      %p135 = por %p133, %p134
      %s137 = sadd.s32 %s136, 1
      %p140 = scmp.eq.s32.totalorder %s18, 1
      %p141 = scmp.ne.s32.totalorder %s136, %s138
      %p142 = scmp.eq.s32.totalorder %s18, 0
      %p143 = por %p141, %p142
      %p144 = scmp.ne.s32.totalorder %s136, %s138
      %p145 = scmp.eq.s32.totalorder %s23, 1
      %p146 = por %p144, %p145
      %p147 = scmp.ne.s32.totalorder %s138, %s139
      %p148 = scmp.eq.s32.totalorder %s23, 0
      %p149 = por %p147, %p148
      %p150 = scmp.ne.s32.totalorder %s138, %s139
      %p151 = scmp.eq.s32.totalorder %s24, 1
      %p152 = por %p150, %p151
      %p154 = scmp.ne.s32.totalorder %s139, %s153
      %p155 = scmp.eq.s32.totalorder %s24, 0
      %p156 = por %p154, %p155
      %s158 = sadd.s32 %s157, 1
      %p161 = scmp.eq.s32.totalorder %s18, 1
      %p162 = scmp.ne.s32.totalorder %s157, %s159
      %p163 = scmp.eq.s32.totalorder %s18, 0
      %p164 = por %p162, %p163
      %p165 = scmp.ne.s32.totalorder %s157, %s159
      %p166 = scmp.eq.s32.totalorder %s23, 1
      %p167 = por %p165, %p166
      %p168 = scmp.ne.s32.totalorder %s159, %s160
      %p169 = scmp.eq.s32.totalorder %s23, 0
      %p170 = por %p168, %p169
      %p171 = scmp.ne.s32.totalorder %s159, %s160
      %p172 = scmp.eq.s32.totalorder %s24, 1
      %p173 = por %p171, %p172
      %p175 = scmp.ne.s32.totalorder %s160, %s174
      %p176 = scmp.eq.s32.totalorder %s24, 0
      %p177 = por %p175, %p176
      %s178 = ssub.s32 %s18, %s25
      %p179 = scmp.eq.s32.totalorder %s178, 0
      %s181 = sadd.s32 %s180, 1
      %s182 = scalar_select %p179, %s180, %s181
      %p185 = pneg %p179
      %p186 = scmp.eq.s32.totalorder %s18, 1
      %p187 = por %p185, %p186
      %p188 = scmp.ne.s32.totalorder %s180, %s183
      %p189 = scmp.eq.s32.totalorder %s18, 0
      %p190 = por %p188, %p189
      %p191 = scmp.ne.s32.totalorder %s180, %s183
      %p192 = scmp.eq.s32.totalorder %s23, 1
      %p193 = por %p191, %p192
      %p194 = scmp.ne.s32.totalorder %s183, %s184
      %p195 = scmp.eq.s32.totalorder %s23, 0
      %p196 = por %p194, %p195
      %p197 = scmp.ne.s32.totalorder %s183, %s184
      %p198 = scmp.eq.s32.totalorder %s24, 1
      %p199 = por %p197, %p198
      %p201 = scmp.ne.s32.totalorder %s184, %s200
      %p202 = scmp.eq.s32.totalorder %s24, 0
      %p203 = por %p201, %p202
      %p204 = scmp.le.s32.totalorder 1, %s18
      %p205 = scmp.lt.s32.totalorder %s18, 3
      %p206 = pnand %p204, %p205
      %p207 = pneg %p206
      // Predicated region
      $region9: #{tpu_custom_call.1} parent=5 // pred_check
        _
      $region10: #{tpu_custom_call.1} parent=5 // pred_check_branch
        %209 = sbr.rel (%p206) target = $region12
      $region11: #{tpu_custom_call.1} parent=5 // pred_region
        %s210 = ssub.s32 %s18, 1
        // Predicated region
        $region13: #{tpu_custom_call.1} parent=11 // pred_check
          %p211 = pneg %p65
        $region14: #{tpu_custom_call.1} parent=11 // pred_check_branch
          %213 = sbr.rel (%p211) target = $region16
        $region15: #{tpu_custom_call.1} parent=11 // pred_region
          _
        $region16: #{tpu_custom_call.1} parent=11 // pred_fallthru
          _
        // Predicated region
        $region17: #{tpu_custom_call.1} parent=11 // pred_check
          %p214 = pneg %p86
        $region18: #{tpu_custom_call.1} parent=11 // pred_check_branch
          %216 = sbr.rel (%p214) target = $region20
        $region19: #{tpu_custom_call.1} parent=11 // pred_region
          _
        $region20: #{tpu_custom_call.1} parent=11 // pred_fallthru
          _
        // Predicated region
        $region21: #{tpu_custom_call.1} parent=11 // pred_check
          %p217 = pneg %p107
        $region22: #{tpu_custom_call.1} parent=11 // pred_check_branch
          %219 = sbr.rel (%p217) target = $region24
        $region23: #{tpu_custom_call.1} parent=11 // pred_region
          _
        $region24: #{tpu_custom_call.1} parent=11 // pred_fallthru
          _
        // Predicated region
        $region25: #{tpu_custom_call.1} parent=11 // pred_check
          %p220 = pneg %p128
        $region26: #{tpu_custom_call.1} parent=11 // pred_check_branch
          %222 = sbr.rel (%p220) target = $region28
        $region27: #{tpu_custom_call.1} parent=11 // pred_region
          _
        $region28: #{tpu_custom_call.1} parent=11 // pred_fallthru
          _
        // Predicated region
        $region29: #{tpu_custom_call.1} parent=11 // pred_check
          %p223 = pneg %p149
        $region30: #{tpu_custom_call.1} parent=11 // pred_check_branch
          %225 = sbr.rel (%p223) target = $region32
        $region31: #{tpu_custom_call.1} parent=11 // pred_region
          _
        $region32: #{tpu_custom_call.1} parent=11 // pred_fallthru
          _
        // Predicated region
        $region33: #{tpu_custom_call.1} parent=11 // pred_check
          %p226 = pneg %p170
        $region34: #{tpu_custom_call.1} parent=11 // pred_check_branch
          %228 = sbr.rel (%p226) target = $region36
        $region35: #{tpu_custom_call.1} parent=11 // pred_region
          _
        $region36: #{tpu_custom_call.1} parent=11 // pred_fallthru
          _
      $region12: #{tpu_custom_call.1} parent=5 // pred_fallthru
        _
      %p229 = scmp.lt.s32.totalorder %s18, 2
      // Predicated region
      $region37: #{tpu_custom_call.1} parent=5 // pred_check
        %p230 = pneg %p229
      $region38: #{tpu_custom_call.1} parent=5 // pred_check_branch
        %232 = sbr.rel (%p230) target = $region40
      $region39: #{tpu_custom_call.1} parent=5 // pred_region
        // Predicated region
        $region41: #{tpu_custom_call.1} parent=39 // pred_check
          %p233 = pneg %p38
        $region42: #{tpu_custom_call.1} parent=39 // pred_check_branch
          %235 = sbr.rel (%p233) target = $region44
        $region43: #{tpu_custom_call.1} parent=39 // pred_region
          %s236 = smul.u32 2, %s18
          %s237 = ssub.s32 3, %s236
          %p238 = scmp.lt.s32.totalorder %s237, 2
          %s239 = scalar_select %p238, %s237, 2
          %s240 = smul.u32 4, %s239
          %p241 = scmp.lt.s32.totalorder %s236, 2
          %s242 = scalar_select %p241, %s236, 2
          %s243 = smul.addr %s242, 4
          %s244 = scalar_lea.vmem %s0, %s243
          %s245 = smul.u32 2, %s18
          %s246 = ssub.s32 3, %s245
          %p247 = scmp.lt.s32.totalorder %s246, 2
          %s248 = scalar_select %p247, %s246, 2
          %s249 = smul.u32 4, %s248
        $region44: #{tpu_custom_call.1} parent=39 // pred_fallthru
          _
      $region40: #{tpu_custom_call.1} parent=5 // pred_fallthru
        _
      %p250 = scmp.le.s32.totalorder 1, %s18
      %p251 = scmp.lt.s32.totalorder %s18, 3
      %p252 = pnand %p250, %p251
      %p253 = pneg %p252
      // Predicated region
      $region45: #{tpu_custom_call.1} parent=5 // pred_check
        _
      $region46: #{tpu_custom_call.1} parent=5 // pred_check_branch
        %255 = sbr.rel (%p252) target = $region48
      $region47: #{tpu_custom_call.1} parent=5 // pred_region
        %s256 = ssub.s32 %s18, 1
        %s257 = smul.u32 2, %s23
        %s258 = ssub.s32 3, %s257
        %p259 = scmp.lt.s32.totalorder %s258, 2
        %s260 = scalar_select %p259, %s258, 2
        %s261 = smul.u32 4, %s260
        %p262 = scmp.lt.s32.totalorder %s257, 2
        %s263 = scalar_select %p262, %s257, 2
        %s264 = smul.addr %s263, 4
        %s265 = scalar_lea.vmem %s0, %s264
        %p266 = pneg %p44
        %p267 = pneg %p41
        %p268 = pneg %p65
        %p269 = pneg %p62
        %p270 = pneg %p86
        %p271 = pneg %p83
        %p272 = pneg %p107
        %p273 = pneg %p104
        %p274 = pneg %p128
        %p275 = pneg %p125
        %p276 = pneg %p149
        %p277 = pneg %p146
        %p278 = pneg %p170
        %p279 = pneg %p167
        %p280 = pneg %p196
        %p281 = pneg %p193
        %s282 = sand.u32 %s183, 1
        %s283 = scalar_lea.sflag [#allocation5], %s282
        %s284 = sand.u32 %s183, 1
        %s285 = smul.addr %s284, 2
        %s286 = scalar_lea.vmem [#allocation4], %s285
        %s287 = smul.u32 2, %s23
        %s288 = ssub.s32 3, %s287
        %p289 = scmp.lt.s32.totalorder %s288, 2
        %s290 = scalar_select %p289, %s288, 2
        %s291 = smul.u32 4, %s290
        %p292 = scmp.lt.s32.totalorder %s287, 2
        %s293 = scalar_select %p292, %s287, 2
        %s294 = smul.addr %s293, 4
        %s295 = scalar_lea.vmem %s0, %s294
        %s296 = smul.u32 2, %s23
        %s297 = ssub.s32 3, %s296
        %p298 = scmp.lt.s32.totalorder %s297, 2
        %s299 = scalar_select %p298, %s297, 2
        %s300 = smul.u32 4, %s299
        %s301 = smul.u32 2, %s23
        %s302 = ssub.s32 3, %s301
        %p303 = scmp.lt.s32.totalorder %s302, 2
        %s304 = scalar_select %p303, %s302, 2
        %v305 = vld [vmem:[%s2] sm:$0xff]
        %v306 = vld [vmem:[%s2 + $0x8] sm:$0x7f]
        %v307 = vld [vmem:[%s295] ss:$4 sm:$0x3]
        %v308 = vld [vmem:[%s1] sm:$0xff]
        %v309 = vld [vmem:[%s1 + $0x8] sm:$0x7f]
        %311 = vset.pattern.permute.xlu0 0
        %312 = vperm.xlu0 %311, %v308
        %v313 = vpop.permute.xlu0 %312
        %316 = vset.pattern.permute.xlu0 0
        %317 = vperm.xlu0 %316, %v309
        %v318 = vpop.permute.xlu0 %317
        %v321 = vperm.slane %v307, 0
        %v322 = vperm.slane %v307, 1
        %v325 = vmul.f32 %v313, %v321
        %v326 = vmul.f32 %v313, %v322
        %v327 = vmul.f32 %v318, %v321
        %v328 = vmul.f32 %v318, %v322
        %330 = vset.pattern.permute.xlu0 0
        %331 = vperm.xlu0 %330, %v305
        %v332 = vpop.permute.xlu0 %331
        %335 = vset.pattern.permute.xlu0 0
        %336 = vperm.xlu0 %335, %v306
        %v337 = vpop.permute.xlu0 %336
        %v339 = vadd.f32 %v332, %v325
        %v340 = vadd.f32 %v332, %v326
        %v341 = vadd.f32 %v337, %v327
        %v342 = vadd.f32 %v337, %v328
        %s343 = scalar_lea.vmem %s295, 1
        %v344 = vld [vmem:[%s343] ss:$4 sm:$0x3]
        %345 = vset.pattern.permute.xlu0 1
        %346 = vperm.xlu0 %345, %v308
        %v347 = vpop.permute.xlu0 %346
        %349 = vset.pattern.permute.xlu0 1
        %350 = vperm.xlu0 %349, %v309
        %v351 = vpop.permute.xlu0 %350
        %v354 = vperm.slane %v344, 0
        %v355 = vperm.slane %v344, 1
        %v358 = vmul.f32 %v347, %v354
        %v359 = vmul.f32 %v347, %v355
        %v360 = vmul.f32 %v351, %v354
        %v361 = vmul.f32 %v351, %v355
        %v362 = vadd.f32 %v339, %v358
        %v363 = vadd.f32 %v340, %v359
        %v364 = vadd.f32 %v341, %v360
        %v365 = vadd.f32 %v342, %v361
        %s366 = scalar_lea.vmem %s295, 2
        %v367 = vld [vmem:[%s366] ss:$4 sm:$0x3]
        %368 = vset.pattern.permute.xlu0 2
        %369 = vperm.xlu0 %368, %v308
        %v370 = vpop.permute.xlu0 %369
        %372 = vset.pattern.permute.xlu0 2
        %373 = vperm.xlu0 %372, %v309
        %v374 = vpop.permute.xlu0 %373
        %v377 = vperm.slane %v367, 0
        %v378 = vperm.slane %v367, 1
        %v381 = vmul.f32 %v370, %v377
        %v382 = vmul.f32 %v370, %v378
        %v383 = vmul.f32 %v374, %v377
        %v384 = vmul.f32 %v374, %v378
        %v385 = vadd.f32 %v362, %v381
        %v386 = vadd.f32 %v363, %v382
        %v387 = vadd.f32 %v364, %v383
        %v388 = vadd.f32 %v365, %v384
        %v389 = vmul.f32 %v385, 0.5
        %v390 = vmul.f32 %v386, 0.5
        %v391 = vmul.f32 %v387, 0.5
        %v392 = vmul.f32 %v388, 0.5
        %v393 = vtanh.pop %v389
        %v394 = vtanh.pop %v390
        %v395 = vtanh.pop %v391
        %v396 = vtanh.pop %v392
        %v397 = vmul.f32 %v393, 0.5
        %v398 = vmul.f32 %v394, 0.5
        %v399 = vmul.f32 %v395, 0.5
        %v400 = vmul.f32 %v396, 0.5
        %v401 = vadd.f32 %v397, 0.5
        %v402 = vadd.f32 %v398, 0.5
        %v403 = vadd.f32 %v399, 0.5
        %v404 = vadd.f32 %v400, 0.5
        %405 = vst [vmem:[#allocation2] sm:$0xff] %v401
        %406 = vst [vmem:[#allocation2 + $0x8] sm:$0xff] %v402
        %407 = vst [vmem:[#allocation2 + $0x10] sm:$0x7f] %v403
        %408 = vst [vmem:[#allocation2 + $0x18] sm:$0x7f] %v404
        %v409 = vld [vmem:[%s4] sm:$0xff]
        %v410 = vld [vmem:[%s4 + $0x8] sm:$0x3]
        %v411 = vld [vmem:[#allocation2] ss:$8 sm:$0x3]
        %v412 = vld [vmem:[%s3] sm:$0xff]
        %v413 = vld [vmem:[%s3 + $0x8] sm:$0x3]
        %415 = vset.pattern.permute.xlu0 0
        %416 = vperm.xlu0 %415, %v412
        %v417 = vpop.permute.xlu0 %416
        %420 = vset.pattern.permute.xlu0 0
        %421 = vperm.xlu0 %420, %v413
        %v422 = vpop.permute.xlu0 %421
        %v425 = vperm.slane %v411, 0
        %v426 = vperm.slane %v411, 1
        %v429 = vmul.f32 %v417, %v425
        %v430 = vmul.f32 %v417, %v426
        %v431 = vmul.f32 %v422, %v425
        %v432 = vmul.f32 %v422, %v426
        %434 = vset.pattern.permute.xlu0 0
        %435 = vperm.xlu0 %434, %v409
        %v436 = vpop.permute.xlu0 %435
        %439 = vset.pattern.permute.xlu0 0
        %440 = vperm.xlu0 %439, %v410
        %v441 = vpop.permute.xlu0 %440
        %v443 = vadd.f32 %v436, %v429
        %v444 = vadd.f32 %v436, %v430
        %v445 = vadd.f32 %v441, %v431
        %v446 = vadd.f32 %v441, %v432
        %s447 = scalar_lea.vmem [#allocation2], 1
        %v448 = vld [vmem:[%s447] ss:$8 sm:$0x3]
        %449 = vset.pattern.permute.xlu0 1
        %450 = vperm.xlu0 %449, %v412
        %v451 = vpop.permute.xlu0 %450
        %453 = vset.pattern.permute.xlu0 1
        %454 = vperm.xlu0 %453, %v413
        %v455 = vpop.permute.xlu0 %454
        %v458 = vperm.slane %v448, 0
        %v459 = vperm.slane %v448, 1
        %v462 = vmul.f32 %v451, %v458
        %v463 = vmul.f32 %v451, %v459
        %v464 = vmul.f32 %v455, %v458
        %v465 = vmul.f32 %v455, %v459
        %v466 = vadd.f32 %v443, %v462
        %v467 = vadd.f32 %v444, %v463
        %v468 = vadd.f32 %v445, %v464
        %v469 = vadd.f32 %v446, %v465
        %s470 = scalar_lea.vmem [#allocation2], 2
        %v471 = vld [vmem:[%s470] ss:$8 sm:$0x3]
        %472 = vset.pattern.permute.xlu0 2
        %473 = vperm.xlu0 %472, %v412
        %v474 = vpop.permute.xlu0 %473
        %476 = vset.pattern.permute.xlu0 2
        %477 = vperm.xlu0 %476, %v413
        %v478 = vpop.permute.xlu0 %477
        %v481 = vperm.slane %v471, 0
        %v482 = vperm.slane %v471, 1
        %v485 = vmul.f32 %v474, %v481
        %v486 = vmul.f32 %v474, %v482
        %v487 = vmul.f32 %v478, %v481
        %v488 = vmul.f32 %v478, %v482
        %v489 = vadd.f32 %v466, %v485
        %v490 = vadd.f32 %v467, %v486
        %v491 = vadd.f32 %v468, %v487
        %v492 = vadd.f32 %v469, %v488
        %s493 = scalar_lea.vmem [#allocation2], 3
        %v494 = vld [vmem:[%s493] ss:$8 sm:$0x3]
        %495 = vset.pattern.permute.xlu0 3
        %496 = vperm.xlu0 %495, %v412
        %v497 = vpop.permute.xlu0 %496
        %499 = vset.pattern.permute.xlu0 3
        %500 = vperm.xlu0 %499, %v413
        %v501 = vpop.permute.xlu0 %500
        %v504 = vperm.slane %v494, 0
        %v505 = vperm.slane %v494, 1
        %v508 = vmul.f32 %v497, %v504
        %v509 = vmul.f32 %v497, %v505
        %v510 = vmul.f32 %v501, %v504
        %v511 = vmul.f32 %v501, %v505
        %v512 = vadd.f32 %v489, %v508
        %v513 = vadd.f32 %v490, %v509
        %v514 = vadd.f32 %v491, %v510
        %v515 = vadd.f32 %v492, %v511
        %s516 = scalar_lea.vmem [#allocation2], 4
        %v517 = vld [vmem:[%s516] ss:$8 sm:$0x3]
        %518 = vset.pattern.permute.xlu0 4
        %519 = vperm.xlu0 %518, %v412
        %v520 = vpop.permute.xlu0 %519
        %522 = vset.pattern.permute.xlu0 4
        %523 = vperm.xlu0 %522, %v413
        %v524 = vpop.permute.xlu0 %523
        %v527 = vperm.slane %v517, 0
        %v528 = vperm.slane %v517, 1
        %v531 = vmul.f32 %v520, %v527
        %v532 = vmul.f32 %v520, %v528
        %v533 = vmul.f32 %v524, %v527
        %v534 = vmul.f32 %v524, %v528
        %v535 = vadd.f32 %v512, %v531
        %v536 = vadd.f32 %v513, %v532
        %v537 = vadd.f32 %v514, %v533
        %v538 = vadd.f32 %v515, %v534
        %s539 = scalar_lea.vmem [#allocation2], 5
        %v540 = vld [vmem:[%s539] ss:$8 sm:$0x3]
        %541 = vset.pattern.permute.xlu0 5
        %542 = vperm.xlu0 %541, %v412
        %v543 = vpop.permute.xlu0 %542
        %545 = vset.pattern.permute.xlu0 5
        %546 = vperm.xlu0 %545, %v413
        %v547 = vpop.permute.xlu0 %546
        %v550 = vperm.slane %v540, 0
        %v551 = vperm.slane %v540, 1
        %v554 = vmul.f32 %v543, %v550
        %v555 = vmul.f32 %v543, %v551
        %v556 = vmul.f32 %v547, %v550
        %v557 = vmul.f32 %v547, %v551
        %v558 = vadd.f32 %v535, %v554
        %v559 = vadd.f32 %v536, %v555
        %v560 = vadd.f32 %v537, %v556
        %v561 = vadd.f32 %v538, %v557
        %s562 = scalar_lea.vmem [#allocation2], 6
        %v563 = vld [vmem:[%s562] ss:$8 sm:$0x3]
        %564 = vset.pattern.permute.xlu0 6
        %565 = vperm.xlu0 %564, %v412
        %v566 = vpop.permute.xlu0 %565
        %568 = vset.pattern.permute.xlu0 6
        %569 = vperm.xlu0 %568, %v413
        %v570 = vpop.permute.xlu0 %569
        %v573 = vperm.slane %v563, 0
        %v574 = vperm.slane %v563, 1
        %v577 = vmul.f32 %v566, %v573
        %v578 = vmul.f32 %v566, %v574
        %v579 = vmul.f32 %v570, %v573
        %v580 = vmul.f32 %v570, %v574
        %v581 = vadd.f32 %v558, %v577
        %v582 = vadd.f32 %v559, %v578
        %v583 = vadd.f32 %v560, %v579
        %v584 = vadd.f32 %v561, %v580
        %s585 = scalar_lea.vmem [#allocation2], 7
        %v586 = vld [vmem:[%s585] ss:$8 sm:$0x3]
        %587 = vset.pattern.permute.xlu0 7
        %588 = vperm.xlu0 %587, %v412
        %v589 = vpop.permute.xlu0 %588
        %591 = vset.pattern.permute.xlu0 7
        %592 = vperm.xlu0 %591, %v413
        %v593 = vpop.permute.xlu0 %592
        %v596 = vperm.slane %v586, 0
        %v597 = vperm.slane %v586, 1
        %v600 = vmul.f32 %v589, %v596
        %v601 = vmul.f32 %v589, %v597
        %v602 = vmul.f32 %v593, %v596
        %v603 = vmul.f32 %v593, %v597
        %v604 = vadd.f32 %v581, %v600
        %v605 = vadd.f32 %v582, %v601
        %v606 = vadd.f32 %v583, %v602
        %v607 = vadd.f32 %v584, %v603
        %s608 = scalar_lea.vmem [#allocation2], 16
        %v609 = vld [vmem:[%s608] ss:$8 sm:$0x3]
        %610 = vset.pattern.permute.xlu0 8
        %611 = vperm.xlu0 %610, %v412
        %v612 = vpop.permute.xlu0 %611
        %614 = vset.pattern.permute.xlu0 8
        %615 = vperm.xlu0 %614, %v413
        %v616 = vpop.permute.xlu0 %615
        %v619 = vperm.slane %v609, 0
        %v620 = vperm.slane %v609, 1
        %v623 = vmul.f32 %v612, %v619
        %v624 = vmul.f32 %v612, %v620
        %v625 = vmul.f32 %v616, %v619
        %v626 = vmul.f32 %v616, %v620
        %v627 = vadd.f32 %v604, %v623
        %v628 = vadd.f32 %v605, %v624
        %v629 = vadd.f32 %v606, %v625
        %v630 = vadd.f32 %v607, %v626
        %s631 = scalar_lea.vmem [#allocation2], 17
        %v632 = vld [vmem:[%s631] ss:$8 sm:$0x3]
        %633 = vset.pattern.permute.xlu0 9
        %634 = vperm.xlu0 %633, %v412
        %v635 = vpop.permute.xlu0 %634
        %637 = vset.pattern.permute.xlu0 9
        %638 = vperm.xlu0 %637, %v413
        %v639 = vpop.permute.xlu0 %638
        %v642 = vperm.slane %v632, 0
        %v643 = vperm.slane %v632, 1
        %v646 = vmul.f32 %v635, %v642
        %v647 = vmul.f32 %v635, %v643
        %v648 = vmul.f32 %v639, %v642
        %v649 = vmul.f32 %v639, %v643
        %v650 = vadd.f32 %v627, %v646
        %v651 = vadd.f32 %v628, %v647
        %v652 = vadd.f32 %v629, %v648
        %v653 = vadd.f32 %v630, %v649
        %s654 = scalar_lea.vmem [#allocation2], 18
        %v655 = vld [vmem:[%s654] ss:$8 sm:$0x3]
        %656 = vset.pattern.permute.xlu0 10
        %657 = vperm.xlu0 %656, %v412
        %v658 = vpop.permute.xlu0 %657
        %660 = vset.pattern.permute.xlu0 10
        %661 = vperm.xlu0 %660, %v413
        %v662 = vpop.permute.xlu0 %661
        %v665 = vperm.slane %v655, 0
        %v666 = vperm.slane %v655, 1
        %v669 = vmul.f32 %v658, %v665
        %v670 = vmul.f32 %v658, %v666
        %v671 = vmul.f32 %v662, %v665
        %v672 = vmul.f32 %v662, %v666
        %v673 = vadd.f32 %v650, %v669
        %v674 = vadd.f32 %v651, %v670
        %v675 = vadd.f32 %v652, %v671
        %v676 = vadd.f32 %v653, %v672
        %s677 = scalar_lea.vmem [#allocation2], 19
        %v678 = vld [vmem:[%s677] ss:$8 sm:$0x3]
        %679 = vset.pattern.permute.xlu0 11
        %680 = vperm.xlu0 %679, %v412
        %v681 = vpop.permute.xlu0 %680
        %683 = vset.pattern.permute.xlu0 11
        %684 = vperm.xlu0 %683, %v413
        %v685 = vpop.permute.xlu0 %684
        %v688 = vperm.slane %v678, 0
        %v689 = vperm.slane %v678, 1
        %v692 = vmul.f32 %v681, %v688
        %v693 = vmul.f32 %v681, %v689
        %v694 = vmul.f32 %v685, %v688
        %v695 = vmul.f32 %v685, %v689
        %v696 = vadd.f32 %v673, %v692
        %v697 = vadd.f32 %v674, %v693
        %v698 = vadd.f32 %v675, %v694
        %v699 = vadd.f32 %v676, %v695
        %s700 = scalar_lea.vmem [#allocation2], 20
        %v701 = vld [vmem:[%s700] ss:$8 sm:$0x3]
        %702 = vset.pattern.permute.xlu0 12
        %703 = vperm.xlu0 %702, %v412
        %v704 = vpop.permute.xlu0 %703
        %706 = vset.pattern.permute.xlu0 12
        %707 = vperm.xlu0 %706, %v413
        %v708 = vpop.permute.xlu0 %707
        %v711 = vperm.slane %v701, 0
        %v712 = vperm.slane %v701, 1
        %v715 = vmul.f32 %v704, %v711
        %v716 = vmul.f32 %v704, %v712
        %v717 = vmul.f32 %v708, %v711
        %v718 = vmul.f32 %v708, %v712
        %v719 = vadd.f32 %v696, %v715
        %v720 = vadd.f32 %v697, %v716
        %v721 = vadd.f32 %v698, %v717
        %v722 = vadd.f32 %v699, %v718
        %s723 = scalar_lea.vmem [#allocation2], 21
        %v724 = vld [vmem:[%s723] ss:$8 sm:$0x3]
        %725 = vset.pattern.permute.xlu0 13
        %726 = vperm.xlu0 %725, %v412
        %v727 = vpop.permute.xlu0 %726
        %729 = vset.pattern.permute.xlu0 13
        %730 = vperm.xlu0 %729, %v413
        %v731 = vpop.permute.xlu0 %730
        %v734 = vperm.slane %v724, 0
        %v735 = vperm.slane %v724, 1
        %v738 = vmul.f32 %v727, %v734
        %v739 = vmul.f32 %v727, %v735
        %v740 = vmul.f32 %v731, %v734
        %v741 = vmul.f32 %v731, %v735
        %v742 = vadd.f32 %v719, %v738
        %v743 = vadd.f32 %v720, %v739
        %v744 = vadd.f32 %v721, %v740
        %v745 = vadd.f32 %v722, %v741
        %s746 = scalar_lea.vmem [#allocation2], 22
        %v747 = vld [vmem:[%s746] ss:$8 sm:$0x3]
        %748 = vset.pattern.permute.xlu0 14
        %749 = vperm.xlu0 %748, %v412
        %v750 = vpop.permute.xlu0 %749
        %752 = vset.pattern.permute.xlu0 14
        %753 = vperm.xlu0 %752, %v413
        %v754 = vpop.permute.xlu0 %753
        %v757 = vperm.slane %v747, 0
        %v758 = vperm.slane %v747, 1
        %v761 = vmul.f32 %v750, %v757
        %v762 = vmul.f32 %v750, %v758
        %v763 = vmul.f32 %v754, %v757
        %v764 = vmul.f32 %v754, %v758
        %v765 = vadd.f32 %v742, %v761
        %v766 = vadd.f32 %v743, %v762
        %v767 = vadd.f32 %v744, %v763
        %v768 = vadd.f32 %v745, %v764
        %v769 = vmul.f32 %v765, 0.5
        %v770 = vmul.f32 %v766, 0.5
        %v771 = vmul.f32 %v767, 0.5
        %v772 = vmul.f32 %v768, 0.5
        %v773 = vtanh.pop %v769
        %v774 = vtanh.pop %v770
        %v775 = vtanh.pop %v771
        %v776 = vtanh.pop %v772
        %v777 = vmul.f32 %v773, 0.5
        %v778 = vmul.f32 %v774, 0.5
        %v779 = vmul.f32 %v775, 0.5
        %v780 = vmul.f32 %v776, 0.5
        %v781 = vadd.f32 %v777, 0.5
        %v782 = vadd.f32 %v778, 0.5
        %v783 = vadd.f32 %v779, 0.5
        %v784 = vadd.f32 %v780, 0.5
        %v785 = vld [vmem:[%s5] sm:$0xff]
        %v786 = vld [vmem:[%s5 + $0x8] sm:$0x3]
        %788 = vset.pattern.permute.xlu0 0
        %789 = vperm.xlu0 %788, %v785
        %v790 = vpop.permute.xlu0 %789
        %793 = vset.pattern.permute.xlu0 0
        %794 = vperm.xlu0 %793, %v786
        %v795 = vpop.permute.xlu0 %794
        %v797 = vmul.f32 %v790, %v781
        %v798 = vmul.f32 %v790, %v782
        %v799 = vmul.f32 %v795, %v783
        %v800 = vmul.f32 %v795, %v784
        %vm801 = vcmask 1041408
        %v802 = vsel %vm801, %v799, 0.0
        %v803 = vadd.f32 %v797, %v802
        %v804 = vrot.slane %v803, 4
        %v805 = vadd.f32 %v803, %v804
        %v806 = vrot.slane %v805, 2
        %v807 = vadd.f32 %v805, %v806
        %v808 = vrot.slane %v807, 1
        %v809 = vadd.f32 %v807, %v808
        %v810 = vsel %vm801, %v800, 0.0
        %v811 = vadd.f32 %v798, %v810
        %v812 = vrot.slane %v811, 4
        %v813 = vadd.f32 %v811, %v812
        %v814 = vrot.slane %v813, 2
        %v815 = vadd.f32 %v813, %v814
        %v816 = vrot.slane %v815, 1
        %v817 = vadd.f32 %v815, %v816
        %v818 = vld [vmem:[#allocation3] sm:$0x1]
        %820 = vset.pattern.permute.xlu0 0
        %821 = vperm.xlu0 %820, %v818
        %v822 = vpop.permute.xlu0 %821
        %v824 = vperm.slane %v822, 0
        %v825 = vadd.f32 %v809, %v824
        %v826 = vadd.f32 %v817, %v824
        %v829 = vrot.slane %v826, 7
        %vm830 = vcmask 1040384
        %v831 = vsel %vm830, %v825, %v829
        %v833 = vlaneseq
        %vm834 = vcmp.ge.s32.totalorder %v833, 0
        %vm835 = vcmp.lt.s32.totalorder %v833, 256
        %vm836 = vmand %vm834, %vm835
        %837 = vst.msk [vmem:[%s286] sm:$0x3] %vm836, %v831
        %s838 = sand.u32 %s183, 1
        %s839 = scalar_lea.sflag [#allocation5], %s838
        %s840 = sand.u32 %s183, 1
        %s841 = smul.addr %s840, 2
        %s842 = scalar_lea.vmem [#allocation4], %s841
        // Predicated region
        $region49: #{tpu_custom_call.1} parent=47 // pred_check
          %p843 = pneg %p193
        $region50: #{tpu_custom_call.1} parent=47 // pred_check_branch
          %845 = sbr.rel (%p843) target = $region52
        $region51: #{tpu_custom_call.1} parent=47 // pred_region
          %s846 = smul.u32 2, %s23
          %s847 = ssub.s32 3, %s846
          %p848 = scmp.lt.s32.totalorder %s847, 2
          %s849 = scalar_select %p848, %s847, 2
          %s850 = ssub.s32 2, %s849
          %s851 = sshll.u32 %s850, 4
          %852 = vsyncadd %s839, %s851
          %p853 = scmp.ne.s32.totalorder 0, %s849
          %s854 = scalar_lea.hbm %s7, %s846
          %s855 = sshll.u32 %s849, 4
          %s856 = sshll.u32 %s842, 4
          %s857 = int_to_ptr.vmem [resolvable:$true] %s856
          %s858 = sshll.u32 %s854, 4
          %s859 = int_to_ptr.hbm [resolvable:$true] %s858
          %861 = dma.vmem_to_hbm [thread:$0]  (%p853), %s857, %s855, %s859, %s839
        $region52: #{tpu_custom_call.1} parent=47 // pred_fallthru
          _
      $region48: #{tpu_custom_call.1} parent=5 // pred_fallthru
        _
      %p862 = scmp.le.s32.totalorder 2, %s18
      // Predicated region
      $region53: #{tpu_custom_call.1} parent=5 // pred_check
        %p863 = pneg %p862
      $region54: #{tpu_custom_call.1} parent=5 // pred_check_branch
        %865 = sbr.rel (%p863) target = $region56
      $region55: #{tpu_custom_call.1} parent=5 // pred_region
        %s866 = ssub.s32 %s18, 2
        // Predicated region
        $region57: #{tpu_custom_call.1} parent=55 // pred_check
          %p867 = pneg %p199
        $region58: #{tpu_custom_call.1} parent=55 // pred_check_branch
          %869 = sbr.rel (%p867) target = $region60
        $region59: #{tpu_custom_call.1} parent=55 // pred_region
          %s870 = sand.u32 %s184, 1
          %s871 = scalar_lea.sflag [#allocation5], %s870
          %s872 = sand.u32 %s184, 1
          %s873 = smul.addr %s872, 2
          %s874 = scalar_lea.vmem [#allocation4], %s873
          %876 = dma.done %s871, 32
        $region60: #{tpu_custom_call.1} parent=55 // pred_fallthru
          _
      $region56: #{tpu_custom_call.1} parent=5 // pred_fallthru
        _
    $region6: #{tpu_custom_call.1} parent=1 // loop_footer
      %s22 = sadd.s32 1, %s18
    $region7: #{tpu_custom_call.1} parent=1 // loop_footer_branch
      %17 = sbr.rel target = $region3
    $region8: #{tpu_custom_call.1} parent=1 // loop_exit
      _
    %877 = vsyncpa [#allocation5], 1
    %s878 = scalar_lea.sflag [#allocation5], 1
    %879 = vsyncpa %s878, 1

</llo_original>
